<compile_context>
chip_gen: v7x
topology: tpu7x:2x2x1
jax: 0.10.0
libtpu: 0.0.40
codegen_flags: <defaults>
</compile_context>

<pallas_src>
import functools

import jax
import jax.numpy as jnp
from jax.experimental import pallas as pl
from jax.experimental.pallas import tpu as pltpu


# ---------------------------------------------------------------------------
# Fused GroupNorm + affine + time scale/shift + SiLU (+ residual) kernel
# ---------------------------------------------------------------------------
def _gn_fused_kernel(*refs, eps, has_residual):
    if has_residual:
        x_ref, a_ref, b_ref, res_ref, o_ref = refs
    else:
        x_ref, a_ref, b_ref, o_ref = refs
        res_ref = None

    x = x_ref[...].astype(jnp.float32)                      # (1, 1, S, T)
    n = x.shape[2] * x.shape[3]
    inv_n = 1.0 / float(n)

    # GroupNorm statistics over the whole (channels-in-group x spatial) block.
    row_sum = jnp.sum(x, axis=3, keepdims=True)             # (1, 1, S, 1)  lane reduce (XLU)
    mean = jnp.sum(row_sum, axis=2, keepdims=True) * inv_n  # (1, 1, 1, 1)
    xc = x - mean                                           # reused for var and output
    row_sq = jnp.sum(xc * xc, axis=3, keepdims=True)
    var = jnp.sum(row_sq, axis=2, keepdims=True) * inv_n
    inv = jax.lax.rsqrt(var + eps)

    a = a_ref[...].astype(jnp.float32)                      # (1, 1, S, 1) per-row scale
    b = b_ref[...].astype(jnp.float32)                      # (1, 1, S, 1) per-row shift
    y = xc * (inv * a) + b

    # SiLU (exp goes to the EUP slot; essentially free under the HBM roofline)
    y = y * (1.0 / (1.0 + jnp.exp(-y)))

    if has_residual:
        y = y + res_ref[...].astype(jnp.float32)

    o_ref[...] = y.astype(o_ref.dtype)


def _pick_group_layout(Cg, D, H, W):
    """Choose a 2-D (S, T) view of one group's (Cg, D, H, W) slab.

    T must divide D*H*W so per-channel coefficients are constant per sublane row.
    Prefer T a multiple of 128 (lane-dense, unmasked stores) and S a multiple of 8
    (full sublane occupancy).  Fall back to the (Cg*D, H*W) view otherwise.
    """
    n_sp = D * H * W
    total = Cg * n_sp
    cands = [t for t in range(128, min(n_sp, 4096) + 1, 128) if n_sp % t == 0]
    if cands:
        perfect = [t for t in cands if (total // t) % 8 == 0]
        ok = [t for t in cands if total // t >= 8]
        pool = perfect or ok or cands
        T = max(pool)
        return total // T, T
    return Cg * D, H * W


def fused_groupnorm_scaleshift_silu(x, gamma, beta, scale, shift, *, groups,
                                    residual=None, eps=1e-5):
    """x: (B, C, D, H, W). gamma/beta: (C,). scale/shift: (B, C) or None.
    residual: optional (B, C, D, H, W) added AFTER the activation."""
    B, C, D, H, W = x.shape
    G = groups
    assert C % G == 0, "channels must be divisible by groups"
    Cg = C // G
    S, T = _pick_group_layout(Cg, D, H, W)   # per-group 2-D slab (sublane, lane)
    assert S * T == Cg * D * H * W
    R = S // Cg                              # sublane rows per channel

    gamma = gamma.astype(jnp.float32)
    beta = beta.astype(jnp.float32)
    if scale is not None:
        s1 = scale.astype(jnp.float32) + 1.0                        # (B, C)
        a = gamma[None, :] * s1                                     # (B, C)
        b = beta[None, :] * s1 + shift.astype(jnp.float32)          # (B, C)
    else:
        a = jnp.broadcast_to(gamma[None, :], (B, C))
        b = jnp.broadcast_to(beta[None, :], (B, C))

    # Broadcast per-channel coefficients over the R rows each channel occupies.
    a4 = jnp.broadcast_to(a.reshape(B, G, Cg, 1, 1), (B, G, Cg, R, 1)).reshape(B, G, S, 1)
    b4 = jnp.broadcast_to(b.reshape(B, G, Cg, 1, 1), (B, G, Cg, R, 1)).reshape(B, G, S, 1)

    x4 = x.reshape(B, G, S, T)

    has_residual = residual is not None
    inputs = [x4, a4, b4]
    in_specs = [
        pl.BlockSpec((1, 1, S, T), lambda bb, gg: (bb, gg, 0, 0)),
        pl.BlockSpec((1, 1, S, 1), lambda bb, gg: (bb, gg, 0, 0)),
        pl.BlockSpec((1, 1, S, 1), lambda bb, gg: (bb, gg, 0, 0)),
    ]
    if has_residual:
        inputs.append(residual.reshape(B, G, S, T).astype(x.dtype))
        in_specs.append(pl.BlockSpec((1, 1, S, T), lambda bb, gg: (bb, gg, 0, 0)))

    # VMEM budget: double-buffered big blocks (inputs + output) + f32 temporaries.
    # Capped at 64 MiB so the same sizing holds on v7x (64 MiB physical VMEM).
    block_bytes = S * T * x.dtype.itemsize
    n_big_blocks = (3 if has_residual else 2) + 1
    est = n_big_blocks * 2 * block_bytes + 4 * S * T * 4 + (4 << 20)
    vmem_limit = int(min(64 * 1024 * 1024, max(32 * 1024 * 1024, est)))

    kernel = functools.partial(_gn_fused_kernel, eps=eps, has_residual=has_residual)
    out = pl.pallas_call(
        kernel,
        out_shape=jax.ShapeDtypeStruct((B, G, S, T), x.dtype),
        grid_spec=pltpu.PrefetchScalarGridSpec(
            num_scalar_prefetch=0,
            grid=(B, G),
            in_specs=in_specs,
            out_specs=pl.BlockSpec((1, 1, S, T), lambda bb, gg: (bb, gg, 0, 0)),
        ),
        compiler_params=pltpu.CompilerParams(
            dimension_semantics=("parallel", "parallel"),
            vmem_limit_bytes=vmem_limit,
        ),
    )(*inputs)

    return out.reshape(B, C, D, H, W)


# ---------------------------------------------------------------------------
# 1x1x1 residual conv as a Pallas matmul (lane-dense spatial tiles)
# ---------------------------------------------------------------------------
def _res_conv1x1_kernel(x_ref, w_ref, b_ref, o_ref):
    x = x_ref[0].astype(jnp.float32)                         # (C_in, T)
    w = w_ref[...].astype(jnp.float32)                       # (C_out, C_in)
    y = jnp.dot(w, x, preferred_element_type=jnp.float32)    # (C_out, T) on the MXU
    y = y + b_ref[...].astype(jnp.float32)                   # (C_out, 1) broadcast
    o_ref[0] = y.astype(o_ref.dtype)


def _pick_spatial_tile(total, *, max_tile=4096, min_steps=4):
    """Largest 128-multiple divisor of `total` up to ~total/min_steps (cap max_tile)."""
    if total % 128 != 0:
        return total  # full extent: still correct, only masked-store penalty on odd shapes
    target = max(128, min(max_tile, total // min_steps))
    tile = 128
    for t in range(128, target + 1, 128):
        if total % t == 0:
            tile = t
    return tile


def res_conv1x1(x, weight, bias):
    """x: (B, C_in, D, H, W); weight: (C_out, C_in, 1, 1, 1); bias: (C_out,)."""
    B, C_in, D, H, W = x.shape
    C_out = weight.shape[0]
    N = D * H * W
    T = _pick_spatial_tile(N)
    assert N % T == 0

    x3 = x.reshape(B, C_in, N)
    w2 = weight.reshape(C_out, C_in)
    b2 = bias.reshape(C_out, 1)

    out = pl.pallas_call(
        _res_conv1x1_kernel,
        out_shape=jax.ShapeDtypeStruct((B, C_out, N), x.dtype),
        grid_spec=pltpu.PrefetchScalarGridSpec(
            num_scalar_prefetch=0,
            grid=(B, N // T),
            in_specs=[
                pl.BlockSpec((1, C_in, T), lambda b, s: (b, 0, s)),
                pl.BlockSpec((C_out, C_in), lambda b, s: (0, 0)),
                pl.BlockSpec((C_out, 1), lambda b, s: (0, 0)),
            ],
            out_specs=pl.BlockSpec((1, C_out, T), lambda b, s: (b, 0, s)),
        ),
        compiler_params=pltpu.CompilerParams(
            dimension_semantics=("parallel", "parallel"),
        ),
    )(x3, w2, b2)
    return out.reshape(B, C_out, D, H, W)


# ---------------------------------------------------------------------------
# WeightStandardizedConv3d (weight standardization in JAX; conv left to XLA)
# ---------------------------------------------------------------------------
def weight_standardized_conv3d(x, weight, bias):
    eps = 1e-5 if x.dtype == jnp.float32 else 1e-3
    w = weight.astype(jnp.float32)
    mean = jnp.mean(w, axis=(1, 2, 3, 4), keepdims=True)
    var = jnp.mean((w - mean) ** 2, axis=(1, 2, 3, 4), keepdims=True)  # unbiased=False
    w_norm = ((w - mean) * jax.lax.rsqrt(var + eps)).astype(x.dtype)
    # TODO(synk): 3x3x3 spatial conv has no clean Pallas equivalent here; dispatched to XLA.
    out = jax.lax.conv_general_dilated(
        x, w_norm,
        window_strides=(1, 1, 1),
        padding=((1, 1), (1, 1), (1, 1)),
        dimension_numbers=("NCDHW", "OIDHW", "NCDHW"),
    )
    return out + bias.reshape(1, -1, 1, 1, 1).astype(out.dtype)


# ---------------------------------------------------------------------------
# ResnetBlock forward
# ---------------------------------------------------------------------------
def resnet_block_forward(params, x, time_emb=None, *, groups=8):
    scale = shift = None
    if time_emb is not None and params.get("mlp_w") is not None:
        t = jax.nn.silu(time_emb.astype(jnp.float32))
        t = t @ params["mlp_w"].astype(jnp.float32).T + params["mlp_b"].astype(jnp.float32)
        scale, shift = jnp.split(t, 2, axis=1)               # each (B, dim_out)

    # residual path
    if params.get("res_w") is not None:
        res = res_conv1x1(x, params["res_w"], params["res_b"])
    else:
        res = x

    # block1: WS-conv -> fused(GroupNorm + scale/shift + SiLU)
    h = weight_standardized_conv3d(x, params["conv1_w"], params["conv1_b"])
    h = fused_groupnorm_scaleshift_silu(
        h, params["gn1_gamma"], params["gn1_beta"], scale, shift, groups=groups)

    # block2: WS-conv -> fused(GroupNorm + scale/shift + SiLU + residual add)
    h = weight_standardized_conv3d(h, params["conv2_w"], params["conv2_b"])
    out = fused_groupnorm_scaleshift_silu(
        h, params["gn2_gamma"], params["gn2_beta"], scale, shift, groups=groups,
        residual=res)
    return out


# ---------------------------------------------------------------------------
# Pure-JAX reference for correctness
# ---------------------------------------------------------------------------
def reference_forward(params, x, time_emb, *, groups):
    xf = x.astype(jnp.float32)
    t = jax.nn.silu(time_emb.astype(jnp.float32))
    t = t @ params["mlp_w"].T + params["mlp_b"]
    scale, shift = jnp.split(t, 2, axis=1)
    scale5 = scale[:, :, None, None, None]
    shift5 = shift[:, :, None, None, None]

    def block(h, w, b, gamma, beta):
        h = weight_standardized_conv3d(h, w, b)
        B, C, D, H, W = h.shape
        hg = h.reshape(B, groups, -1).astype(jnp.float32)
        mean = jnp.mean(hg, axis=2, keepdims=True)
        var = jnp.mean((hg - mean) ** 2, axis=2, keepdims=True)
        hn = ((hg - mean) * jax.lax.rsqrt(var + 1e-5)).reshape(B, C, D, H, W)
        hn = hn * gamma.reshape(1, C, 1, 1, 1) + beta.reshape(1, C, 1, 1, 1)
        hn = hn * (scale5 + 1.0) + shift5
        return jax.nn.silu(hn)

    h = block(xf, params["conv1_w"], params["conv1_b"], params["gn1_gamma"], params["gn1_beta"])
    h = block(h, params["conv2_w"], params["conv2_b"], params["gn2_gamma"], params["gn2_beta"])
    w_res = params["res_w"].reshape(params["res_w"].shape[0], -1)
    res = jnp.einsum("oc,bcdhw->bodhw", w_res, xf) + params["res_b"].reshape(1, -1, 1, 1, 1)
    return (h + res).astype(x.dtype)


if __name__ == "__main__":
    key = jax.random.PRNGKey(0)
    keys = jax.random.split(key, 12)

    B, dim, dim_out = 2, 4, 8
    D = H = W = 8
    groups = 4
    time_emb_dim = 16

    x = jax.random.normal(keys[0], (B, dim, D, H, W), dtype=jnp.float32)
    time_emb = jax.random.normal(keys[1], (B, time_emb_dim), dtype=jnp.float32)

    params = {
        "conv1_w": 0.1 * jax.random.normal(keys[2], (dim_out, dim, 3, 3, 3), jnp.float32),
        "conv1_b": 0.1 * jax.random.normal(keys[3], (dim_out,), jnp.float32),
        "gn1_gamma": 1.0 + 0.1 * jax.random.normal(keys[4], (dim_out,), jnp.float32),
        "gn1_beta": 0.1 * jax.random.normal(keys[5], (dim_out,), jnp.float32),
        "conv2_w": 0.1 * jax.random.normal(keys[6], (dim_out, dim_out, 3, 3, 3), jnp.float32),
        "conv2_b": 0.1 * jax.random.normal(keys[7], (dim_out,), jnp.float32),
        "gn2_gamma": 1.0 + 0.1 * jax.random.normal(keys[8], (dim_out,), jnp.float32),
        "gn2_beta": 0.1 * jax.random.normal(keys[9], (dim_out,), jnp.float32),
        "mlp_w": 0.1 * jax.random.normal(keys[10], (2 * dim_out, time_emb_dim), jnp.float32),
        "mlp_b": jnp.zeros((2 * dim_out,), jnp.float32),
        "res_w": 0.1 * jax.random.normal(keys[11], (dim_out, dim, 1, 1, 1), jnp.float32),
        "res_b": jnp.zeros((dim_out,), jnp.float32),
    }

    fwd = jax.jit(functools.partial(resnet_block_forward, groups=groups))
    out = fwd(params, x, time_emb)
    out = jax.block_until_ready(out)

    ref = reference_forward(params, x, time_emb, groups=groups)
    ref = jax.block_until_ready(ref)

    assert out.shape == (B, dim_out, D, H, W)
    assert out.dtype == x.dtype
    assert jnp.allclose(out, ref, atol=2e-4, rtol=2e-4), "mismatch vs reference"

    print("KERNEL_OK")
</pallas_src>

<mosaic_0001>
module attributes {stable_mosaic.version = 11 : i64} {
  func.func @_gn_fused_kernel(%arg0: i32, %arg1: i32, %arg2: memref<1x1x8x128xf32, #tpu.memory_space<vmem>>, %arg3: memref<1x1x8x1xf32, #tpu.memory_space<vmem>>, %arg4: memref<1x1x8x1xf32, #tpu.memory_space<vmem>>, %arg5: memref<1x1x8x128xf32, #tpu.memory_space<vmem>>) attributes {dimension_semantics = [#tpu.dimension_semantics<parallel>, #tpu.dimension_semantics<parallel>], iteration_bounds = array<i64: 2, 4>, scalar_prefetch = 0 : i64, scratch_operands = 0 : i64, tpu.core_type = #tpu.core_type<tc>, window_params = [{transform_indices = @transform_0, window_bounds = array<i64: 1, 1, 8, 128>}, {transform_indices = @transform_1, window_bounds = array<i64: 1, 1, 8, 1>}, {transform_indices = @transform_2, window_bounds = array<i64: 1, 1, 8, 1>}, {transform_indices = @transform_3, window_bounds = array<i64: 1, 1, 8, 128>}]} {
    %c0 = arith.constant 0 : index
    %c0_0 = arith.constant 0 : index
    %c0_1 = arith.constant 0 : index
    %c0_2 = arith.constant 0 : index
    %0 = vector.load %arg2[%c0, %c0_0, %c0_1, %c0_2] : memref<1x1x8x128xf32, #tpu.memory_space<vmem>>, vector<1x1x8x128xf32>
    %cst = arith.constant dense<0.000000e+00> : vector<1x1x8xf32>
    %1 = vector.multi_reduction <add>, %0, %cst [3] : vector<1x1x8x128xf32> to vector<1x1x8xf32>
    %2 = vector.shape_cast %1 : vector<1x1x8xf32> to vector<1x1x8x1xf32>
    %cst_3 = arith.constant dense<0.000000e+00> : vector<1x1x1xf32>
    %3 = vector.multi_reduction <add>, %2, %cst_3 [2] : vector<1x1x8x1xf32> to vector<1x1x1xf32>
    %4 = vector.shape_cast %3 : vector<1x1x1xf32> to vector<1x1x1x1xf32>
    %cst_4 = arith.constant 9.765625E-4 : f32
    %5 = vector.broadcast %cst_4 : f32 to vector<1x1x1x1xf32>
    %6 = arith.mulf %4, %5 : vector<1x1x1x1xf32>
    %7 = vector.broadcast %6 : vector<1x1x1x1xf32> to vector<1x1x8x128xf32>
    %8 = arith.subf %0, %7 : vector<1x1x8x128xf32>
    %9 = arith.mulf %8, %8 : vector<1x1x8x128xf32>
    %cst_5 = arith.constant dense<0.000000e+00> : vector<1x1x8xf32>
    %10 = vector.multi_reduction <add>, %9, %cst_5 [3] : vector<1x1x8x128xf32> to vector<1x1x8xf32>
    %11 = vector.shape_cast %10 : vector<1x1x8xf32> to vector<1x1x8x1xf32>
    %cst_6 = arith.constant dense<0.000000e+00> : vector<1x1x1xf32>
    %12 = vector.multi_reduction <add>, %11, %cst_6 [2] : vector<1x1x8x1xf32> to vector<1x1x1xf32>
    %13 = vector.shape_cast %12 : vector<1x1x1xf32> to vector<1x1x1x1xf32>
    %cst_7 = arith.constant 9.765625E-4 : f32
    %14 = vector.broadcast %cst_7 : f32 to vector<1x1x1x1xf32>
    %15 = arith.mulf %13, %14 : vector<1x1x1x1xf32>
    %cst_8 = arith.constant 9.99999974E-6 : f32
    %16 = vector.broadcast %cst_8 : f32 to vector<1x1x1x1xf32>
    %17 = arith.addf %15, %16 : vector<1x1x1x1xf32>
    %18 = math.rsqrt %17 : vector<1x1x1x1xf32>
    %c0_9 = arith.constant 0 : index
    %c0_10 = arith.constant 0 : index
    %c0_11 = arith.constant 0 : index
    %c0_12 = arith.constant 0 : index
    %19 = vector.load %arg3[%c0_9, %c0_10, %c0_11, %c0_12] : memref<1x1x8x1xf32, #tpu.memory_space<vmem>>, vector<1x1x8x1xf32>
    %c0_13 = arith.constant 0 : index
    %c0_14 = arith.constant 0 : index
    %c0_15 = arith.constant 0 : index
    %c0_16 = arith.constant 0 : index
    %20 = vector.load %arg4[%c0_13, %c0_14, %c0_15, %c0_16] : memref<1x1x8x1xf32, #tpu.memory_space<vmem>>, vector<1x1x8x1xf32>
    %21 = vector.broadcast %18 : vector<1x1x1x1xf32> to vector<1x1x8x1xf32>
    %22 = arith.mulf %21, %19 : vector<1x1x8x1xf32>
    %23 = vector.broadcast %22 : vector<1x1x8x1xf32> to vector<1x1x8x128xf32>
    %24 = arith.mulf %8, %23 : vector<1x1x8x128xf32>
    %25 = vector.broadcast %20 : vector<1x1x8x1xf32> to vector<1x1x8x128xf32>
    %26 = arith.addf %24, %25 : vector<1x1x8x128xf32>
    %cst_17 = arith.constant 0.000000e+00 : f32
    %27 = vector.broadcast %cst_17 : f32 to vector<1x1x8x128xf32>
    %28 = arith.subf %27, %26 : vector<1x1x8x128xf32>
    %29 = math.exp %28 : vector<1x1x8x128xf32>
    %cst_18 = arith.constant 1.000000e+00 : f32
    %30 = vector.broadcast %cst_18 : f32 to vector<1x1x8x128xf32>
    %31 = arith.addf %30, %29 : vector<1x1x8x128xf32>
    %cst_19 = arith.constant 1.000000e+00 : f32
    %32 = vector.broadcast %cst_19 : f32 to vector<1x1x8x128xf32>
    %33 = arith.divf %32, %31 : vector<1x1x8x128xf32>
    %34 = arith.mulf %26, %33 : vector<1x1x8x128xf32>
    %c0_20 = arith.constant 0 : index
    %c0_21 = arith.constant 0 : index
    %c0_22 = arith.constant 0 : index
    %c0_23 = arith.constant 0 : index
    %35 = vector.load %arg5[%c0_20, %c0_21, %c0_22, %c0_23] : memref<1x1x8x128xf32, #tpu.memory_space<vmem>>, vector<1x1x8x128xf32>
    tpu.vector_store %arg5[%c0_20, %c0_21, %c0_22, %c0_23], %34 {strides = array<i32>} : memref<1x1x8x128xf32, #tpu.memory_space<vmem>>, vector<1x1x8x128xf32>,
    return
  }
  func.func @transform_0(%arg0: i32, %arg1: i32) -> (i32, i32, i32, i32) {
    %c0_i32 = arith.constant 0 : i32
    %c0_i32_0 = arith.constant 0 : i32
    %c0_i32_1 = arith.constant 0 : i32
    return %arg0, %arg1, %c0_i32, %c0_i32_0 : i32, i32, i32, i32
  }
  func.func @transform_1(%arg0: i32, %arg1: i32) -> (i32, i32, i32, i32) {
    %c0_i32 = arith.constant 0 : i32
    %c0_i32_0 = arith.constant 0 : i32
    %c0_i32_1 = arith.constant 0 : i32
    return %arg0, %arg1, %c0_i32, %c0_i32_0 : i32, i32, i32, i32
  }
  func.func @transform_2(%arg0: i32, %arg1: i32) -> (i32, i32, i32, i32) {
    %c0_i32 = arith.constant 0 : i32
    %c0_i32_0 = arith.constant 0 : i32
    %c0_i32_1 = arith.constant 0 : i32
    return %arg0, %arg1, %c0_i32, %c0_i32_0 : i32, i32, i32, i32
  }
  func.func @transform_3(%arg0: i32, %arg1: i32) -> (i32, i32, i32, i32) {
    %c0_i32 = arith.constant 0 : i32
    %c0_i32_0 = arith.constant 0 : i32
    %c0_i32_1 = arith.constant 0 : i32
    return %arg0, %arg1, %c0_i32, %c0_i32_0 : i32, i32, i32, i32
  }
}

module attributes {stable_mosaic.version = 11 : i64} {
  func.func @_res_conv1x1_kernel(%arg0: i32, %arg1: i32, %arg2: memref<1x4x128xf32, #tpu.memory_space<vmem>>, %arg3: memref<8x4xf32, #tpu.memory_space<vmem>>, %arg4: memref<8x1xf32, #tpu.memory_space<vmem>>, %arg5: memref<1x8x128xf32, #tpu.memory_space<vmem>>) attributes {dimension_semantics = [#tpu.dimension_semantics<parallel>, #tpu.dimension_semantics<parallel>], iteration_bounds = array<i64: 2, 4>, scalar_prefetch = 0 : i64, scratch_operands = 0 : i64, tpu.core_type = #tpu.core_type<tc>, window_params = [{transform_indices = @transform_0, window_bounds = array<i64: 1, 4, 128>}, {pipeline_mode = #tpu.pipeline_mode<synchronous>, transform_indices = @transform_1, window_bounds = array<i64: 8, 4>}, {pipeline_mode = #tpu.pipeline_mode<synchronous>, transform_indices = @transform_2, window_bounds = array<i64: 8, 1>}, {transform_indices = @transform_3, window_bounds = array<i64: 1, 8, 128>}]} {
    %c0 = arith.constant 0 : index
    %c0_0 = arith.constant 0 : index
    %c0_1 = arith.constant 0 : index
    %0 = vector.load %arg2[%c0, %c0_0, %c0_1] : memref<1x4x128xf32, #tpu.memory_space<vmem>>, vector<1x4x128xf32>
    %1 = vector.shape_cast %0 : vector<1x4x128xf32> to vector<4x128xf32>
    %c0_2 = arith.constant 0 : index
    %c0_3 = arith.constant 0 : index
    %2 = vector.load %arg3[%c0_2, %c0_3] : memref<8x4xf32, #tpu.memory_space<vmem>>, vector<8x4xf32>
    %cst = arith.constant dense<0.000000e+00> : vector<8x128xf32>
    %3 = tpu.matmul %2, %1, %cst {dimension_numbers = #tpu.dot_dimension_numbers<[1], [0], [0], [1], [0, 0, 1, 1], [], []>} : vector<8x4xf32>, vector<4x128xf32>, vector<8x128xf32> -> vector<8x128xf32>
    %c0_4 = arith.constant 0 : index
    %c0_5 = arith.constant 0 : index
    %4 = vector.load %arg4[%c0_4, %c0_5] : memref<8x1xf32, #tpu.memory_space<vmem>>, vector<8x1xf32>
    %5 = vector.broadcast %4 : vector<8x1xf32> to vector<8x128xf32>
    %6 = arith.addf %3, %5 : vector<8x128xf32>
    %c0_6 = arith.constant 0 : index
    %c0_7 = arith.constant 0 : index
    %c0_8 = arith.constant 0 : index
    %7 = vector.load %arg5[%c0_6, %c0_7, %c0_8] : memref<1x8x128xf32, #tpu.memory_space<vmem>>, vector<1x8x128xf32>
    %8 = vector.shape_cast %7 : vector<1x8x128xf32> to vector<8x128xf32>
    %9 = vector.shape_cast %6 : vector<8x128xf32> to vector<1x8x128xf32>
    tpu.vector_store %arg5[%c0_6, %c0_7, %c0_8], %9 {strides = array<i32>} : memref<1x8x128xf32, #tpu.memory_space<vmem>>, vector<1x8x128xf32>,
    return
  }
  func.func @transform_0(%arg0: i32, %arg1: i32) -> (i32, i32, i32) {
    %c0_i32 = arith.constant 0 : i32
    %c0_i32_0 = arith.constant 0 : i32
    return %arg0, %c0_i32, %arg1 : i32, i32, i32
  }
  func.func @transform_1(%arg0: i32, %arg1: i32) -> (i32, i32) {
    %c0_i32 = arith.constant 0 : i32
    %c0_i32_0 = arith.constant 0 : i32
    %c0_i32_1 = arith.constant 0 : i32
    return %c0_i32, %c0_i32_0 : i32, i32
  }
  func.func @transform_2(%arg0: i32, %arg1: i32) -> (i32, i32) {
    %c0_i32 = arith.constant 0 : i32
    %c0_i32_0 = arith.constant 0 : i32
    %c0_i32_1 = arith.constant 0 : i32
    return %c0_i32, %c0_i32_0 : i32, i32
  }
  func.func @transform_3(%arg0: i32, %arg1: i32) -> (i32, i32, i32) {
    %c0_i32 = arith.constant 0 : i32
    %c0_i32_0 = arith.constant 0 : i32
    return %arg0, %c0_i32, %arg1 : i32, i32, i32
  }
}

module attributes {stable_mosaic.version = 11 : i64} {
  func.func @_gn_fused_kernel(%arg0: i32, %arg1: i32, %arg2: memref<1x1x8x128xf32, #tpu.memory_space<vmem>>, %arg3: memref<1x1x8x1xf32, #tpu.memory_space<vmem>>, %arg4: memref<1x1x8x1xf32, #tpu.memory_space<vmem>>, %arg5: memref<1x1x8x128xf32, #tpu.memory_space<vmem>>, %arg6: memref<1x1x8x128xf32, #tpu.memory_space<vmem>>) attributes {dimension_semantics = [#tpu.dimension_semantics<parallel>, #tpu.dimension_semantics<parallel>], iteration_bounds = array<i64: 2, 4>, scalar_prefetch = 0 : i64, scratch_operands = 0 : i64, tpu.core_type = #tpu.core_type<tc>, window_params = [{transform_indices = @transform_0, window_bounds = array<i64: 1, 1, 8, 128>}, {transform_indices = @transform_1, window_bounds = array<i64: 1, 1, 8, 1>}, {transform_indices = @transform_2, window_bounds = array<i64: 1, 1, 8, 1>}, {transform_indices = @transform_3, window_bounds = array<i64: 1, 1, 8, 128>}, {transform_indices = @transform_4, window_bounds = array<i64: 1, 1, 8, 128>}]} {
    %c0 = arith.constant 0 : index
    %c0_0 = arith.constant 0 : index
    %c0_1 = arith.constant 0 : index
    %c0_2 = arith.constant 0 : index
    %0 = vector.load %arg2[%c0, %c0_0, %c0_1, %c0_2] : memref<1x1x8x128xf32, #tpu.memory_space<vmem>>, vector<1x1x8x128xf32>
    %cst = arith.constant dense<0.000000e+00> : vector<1x1x8xf32>
    %1 = vector.multi_reduction <add>, %0, %cst [3] : vector<1x1x8x128xf32> to vector<1x1x8xf32>
    %2 = vector.shape_cast %1 : vector<1x1x8xf32> to vector<1x1x8x1xf32>
    %cst_3 = arith.constant dense<0.000000e+00> : vector<1x1x1xf32>
    %3 = vector.multi_reduction <add>, %2, %cst_3 [2] : vector<1x1x8x1xf32> to vector<1x1x1xf32>
    %4 = vector.shape_cast %3 : vector<1x1x1xf32> to vector<1x1x1x1xf32>
    %cst_4 = arith.constant 9.765625E-4 : f32
    %5 = vector.broadcast %cst_4 : f32 to vector<1x1x1x1xf32>
    %6 = arith.mulf %4, %5 : vector<1x1x1x1xf32>
    %7 = vector.broadcast %6 : vector<1x1x1x1xf32> to vector<1x1x8x128xf32>
    %8 = arith.subf %0, %7 : vector<1x1x8x128xf32>
    %9 = arith.mulf %8, %8 : vector<1x1x8x128xf32>
    %cst_5 = arith.constant dense<0.000000e+00> : vector<1x1x8xf32>
    %10 = vector.multi_reduction <add>, %9, %cst_5 [3] : vector<1x1x8x128xf32> to vector<1x1x8xf32>
    %11 = vector.shape_cast %10 : vector<1x1x8xf32> to vector<1x1x8x1xf32>
    %cst_6 = arith.constant dense<0.000000e+00> : vector<1x1x1xf32>
    %12 = vector.multi_reduction <add>, %11, %cst_6 [2] : vector<1x1x8x1xf32> to vector<1x1x1xf32>
    %13 = vector.shape_cast %12 : vector<1x1x1xf32> to vector<1x1x1x1xf32>
    %cst_7 = arith.constant 9.765625E-4 : f32
    %14 = vector.broadcast %cst_7 : f32 to vector<1x1x1x1xf32>
    %15 = arith.mulf %13, %14 : vector<1x1x1x1xf32>
    %cst_8 = arith.constant 9.99999974E-6 : f32
    %16 = vector.broadcast %cst_8 : f32 to vector<1x1x1x1xf32>
    %17 = arith.addf %15, %16 : vector<1x1x1x1xf32>
    %18 = math.rsqrt %17 : vector<1x1x1x1xf32>
    %c0_9 = arith.constant 0 : index
    %c0_10 = arith.constant 0 : index
    %c0_11 = arith.constant 0 : index
    %c0_12 = arith.constant 0 : index
    %19 = vector.load %arg3[%c0_9, %c0_10, %c0_11, %c0_12] : memref<1x1x8x1xf32, #tpu.memory_space<vmem>>, vector<1x1x8x1xf32>
    %c0_13 = arith.constant 0 : index
    %c0_14 = arith.constant 0 : index
    %c0_15 = arith.constant 0 : index
    %c0_16 = arith.constant 0 : index
    %20 = vector.load %arg4[%c0_13, %c0_14, %c0_15, %c0_16] : memref<1x1x8x1xf32, #tpu.memory_space<vmem>>, vector<1x1x8x1xf32>
    %21 = vector.broadcast %18 : vector<1x1x1x1xf32> to vector<1x1x8x1xf32>
    %22 = arith.mulf %21, %19 : vector<1x1x8x1xf32>
    %23 = vector.broadcast %22 : vector<1x1x8x1xf32> to vector<1x1x8x128xf32>
    %24 = arith.mulf %8, %23 : vector<1x1x8x128xf32>
    %25 = vector.broadcast %20 : vector<1x1x8x1xf32> to vector<1x1x8x128xf32>
    %26 = arith.addf %24, %25 : vector<1x1x8x128xf32>
    %cst_17 = arith.constant 0.000000e+00 : f32
    %27 = vector.broadcast %cst_17 : f32 to vector<1x1x8x128xf32>
    %28 = arith.subf %27, %26 : vector<1x1x8x128xf32>
    %29 = math.exp %28 : vector<1x1x8x128xf32>
    %cst_18 = arith.constant 1.000000e+00 : f32
    %30 = vector.broadcast %cst_18 : f32 to vector<1x1x8x128xf32>
    %31 = arith.addf %30, %29 : vector<1x1x8x128xf32>
    %cst_19 = arith.constant 1.000000e+00 : f32
    %32 = vector.broadcast %cst_19 : f32 to vector<1x1x8x128xf32>
    %33 = arith.divf %32, %31 : vector<1x1x8x128xf32>
    %34 = arith.mulf %26, %33 : vector<1x1x8x128xf32>
    %c0_20 = arith.constant 0 : index
    %c0_21 = arith.constant 0 : index
    %c0_22 = arith.constant 0 : index
    %c0_23 = arith.constant 0 : index
    %35 = vector.load %arg5[%c0_20, %c0_21, %c0_22, %c0_23] : memref<1x1x8x128xf32, #tpu.memory_space<vmem>>, vector<1x1x8x128xf32>
    %36 = arith.addf %34, %35 : vector<1x1x8x128xf32>
    %c0_24 = arith.constant 0 : index
    %c0_25 = arith.constant 0 : index
    %c0_26 = arith.constant 0 : index
    %c0_27 = arith.constant 0 : index
    %37 = vector.load %arg6[%c0_24, %c0_25, %c0_26, %c0_27] : memref<1x1x8x128xf32, #tpu.memory_space<vmem>>, vector<1x1x8x128xf32>
    tpu.vector_store %arg6[%c0_24, %c0_25, %c0_26, %c0_27], %36 {strides = array<i32>} : memref<1x1x8x128xf32, #tpu.memory_space<vmem>>, vector<1x1x8x128xf32>,
    return
  }
  func.func @transform_0(%arg0: i32, %arg1: i32) -> (i32, i32, i32, i32) {
    %c0_i32 = arith.constant 0 : i32
    %c0_i32_0 = arith.constant 0 : i32
    %c0_i32_1 = arith.constant 0 : i32
    return %arg0, %arg1, %c0_i32, %c0_i32_0 : i32, i32, i32, i32
  }
  func.func @transform_1(%arg0: i32, %arg1: i32) -> (i32, i32, i32, i32) {
    %c0_i32 = arith.constant 0 : i32
    %c0_i32_0 = arith.constant 0 : i32
    %c0_i32_1 = arith.constant 0 : i32
    return %arg0, %arg1, %c0_i32, %c0_i32_0 : i32, i32, i32, i32
  }
  func.func @transform_2(%arg0: i32, %arg1: i32) -> (i32, i32, i32, i32) {
    %c0_i32 = arith.constant 0 : i32
    %c0_i32_0 = arith.constant 0 : i32
    %c0_i32_1 = arith.constant 0 : i32
    return %arg0, %arg1, %c0_i32, %c0_i32_0 : i32, i32, i32, i32
  }
  func.func @transform_3(%arg0: i32, %arg1: i32) -> (i32, i32, i32, i32) {
    %c0_i32 = arith.constant 0 : i32
    %c0_i32_0 = arith.constant 0 : i32
    %c0_i32_1 = arith.constant 0 : i32
    return %arg0, %arg1, %c0_i32, %c0_i32_0 : i32, i32, i32, i32
  }
  func.func @transform_4(%arg0: i32, %arg1: i32) -> (i32, i32, i32, i32) {
    %c0_i32 = arith.constant 0 : i32
    %c0_i32_0 = arith.constant 0 : i32
    %c0_i32_1 = arith.constant 0 : i32
    return %arg0, %arg1, %c0_i32, %c0_i32_0 : i32, i32, i32, i32
  }
}

</mosaic_0001>

<llo_original>
// kernel: resnet_block_forward.4
$region0: #{resnet_block_forward.4}
  #allocation0 [shape = 'u32[]', space=smem, size = 0x4, offset = 0x4, fixed_abs, tag = 'smem constant byte address 0x4 - core index']
  #allocation1 [shape = 'u32[144,128]{1,0:T(1,128)}', space=vmem, size = 0x12000, scoped, tag = 'internal scratch']
  %s0 = inlined_call_operand.vmem [shape: f32[2,4,8,128], index: 0, kind: input, shape index: {}]
  %s1 = inlined_call_operand.vmem [shape: f32[2,4,8,1], index: 1, kind: input, shape index: {}]
  %s2 = inlined_call_operand.vmem [shape: f32[2,4,8,1], index: 2, kind: input, shape index: {}]
  %s3 = inlined_call_operand.vmem [shape: f32[2,4,8,128], index: 3, kind: output, shape index: {}]
  %s4 = sld [smem:[#allocation0]]
  $region45: #{resnet_block_forward.4} parent=0
    _
  %s6 = ssub.s32 1, %s4
  %s7 = scalar_select 0, %s6, %s4
  loop: start=0, step=1, limit=10
  $region2: #{resnet_block_forward.4} parent=0 // loop_pre_header
    _
  $region3: #{resnet_block_forward.4} parent=0 // loop_header
    %s9 = sphi 0, %s13
    %p10 = scmp.ge.s32.totalorder %s9, 10
    %s16 = sphi 0, %s28
    %s17 = sphi 0, %s24
    %s18 = sphi 0, %s16
    %s19 = sphi 0, %s17
    %s20 = sphi 0, %s18
    %s21 = sphi 0, %s19
    %s33 = sphi 0, %s35
    %s36 = sphi 0, %s33
    %s37 = sphi 0, %s36
    %s53 = sphi 0, %s37
    %s61 = sphi 0, %s63
    %s64 = sphi 0, %s61
    %s65 = sphi 0, %s64
    %s81 = sphi 0, %s65
    %s89 = sphi 0, %s91
    %s92 = sphi 0, %s89
    %s93 = sphi 0, %s92
    %s109 = sphi 0, %s93
    %s117 = sphi 0, %s119
    %s120 = sphi 0, %s117
    %s121 = sphi 0, %s120
    %s137 = sphi 0, %s121
  $region4: #{resnet_block_forward.4} parent=0 // loop_header_branch
    %12 = sbr.rel (%p10) target = $region8
  $region5: #{resnet_block_forward.4} parent=0 // loop_body
    %s14 = ssub.s32 %s9, 1
    %s15 = ssub.s32 %s9, 2
    %s22 = sadd.s32 1, %s17
    %p23 = scmp.ge.s32.totalorder %s22, 4
    %s24 = scalar_select %p23, 0, %s22
    %s25 = sadd.s32 1, %s16
    %s26 = scalar_select %p23, %s25, %s16
    %p27 = scmp.ge.s32.totalorder %s26, 2
    %s28 = scalar_select %p27, 0, %s26
    %s29 = ssub.s32 %s16, %s28
    %s30 = ssub.s32 %s17, %s24
    %s31 = sor.u32 %s29, %s30
    %p32 = scmp.eq.s32.totalorder %s31, 0
    %s34 = sadd.s32 %s33, 1
    %s35 = scalar_select %p32, %s33, %s34
    %p38 = pneg %p32
    %p39 = scmp.eq.s32.totalorder %s9, 7
    %p40 = por %p38, %p39
    %p41 = scmp.ne.s32.totalorder %s33, %s36
    %p42 = scmp.eq.s32.totalorder %s9, 0
    %p43 = por %p41, %p42
    %p44 = scmp.ne.s32.totalorder %s33, %s36
    %p45 = scmp.eq.s32.totalorder %s14, 7
    %p46 = por %p44, %p45
    %p47 = scmp.ne.s32.totalorder %s36, %s37
    %p48 = scmp.eq.s32.totalorder %s14, 0
    %p49 = por %p47, %p48
    %p50 = scmp.ne.s32.totalorder %s36, %s37
    %p51 = scmp.eq.s32.totalorder %s15, 7
    %p52 = por %p50, %p51
    %p54 = scmp.ne.s32.totalorder %s37, %s53
    %p55 = scmp.eq.s32.totalorder %s15, 0
    %p56 = por %p54, %p55
    %s57 = ssub.s32 %s16, %s28
    %s58 = ssub.s32 %s17, %s24
    %s59 = sor.u32 %s57, %s58
    %p60 = scmp.eq.s32.totalorder %s59, 0
    %s62 = sadd.s32 %s61, 1
    %s63 = scalar_select %p60, %s61, %s62
    %p66 = pneg %p60
    %p67 = scmp.eq.s32.totalorder %s9, 7
    %p68 = por %p66, %p67
    %p69 = scmp.ne.s32.totalorder %s61, %s64
    %p70 = scmp.eq.s32.totalorder %s9, 0
    %p71 = por %p69, %p70
    %p72 = scmp.ne.s32.totalorder %s61, %s64
    %p73 = scmp.eq.s32.totalorder %s14, 7
    %p74 = por %p72, %p73
    %p75 = scmp.ne.s32.totalorder %s64, %s65
    %p76 = scmp.eq.s32.totalorder %s14, 0
    %p77 = por %p75, %p76
    %p78 = scmp.ne.s32.totalorder %s64, %s65
    %p79 = scmp.eq.s32.totalorder %s15, 7
    %p80 = por %p78, %p79
    %p82 = scmp.ne.s32.totalorder %s65, %s81
    %p83 = scmp.eq.s32.totalorder %s15, 0
    %p84 = por %p82, %p83
    %s85 = ssub.s32 %s16, %s28
    %s86 = ssub.s32 %s17, %s24
    %s87 = sor.u32 %s85, %s86
    %p88 = scmp.eq.s32.totalorder %s87, 0
    %s90 = sadd.s32 %s89, 1
    %s91 = scalar_select %p88, %s89, %s90
    %p94 = pneg %p88
    %p95 = scmp.eq.s32.totalorder %s9, 7
    %p96 = por %p94, %p95
    %p97 = scmp.ne.s32.totalorder %s89, %s92
    %p98 = scmp.eq.s32.totalorder %s9, 0
    %p99 = por %p97, %p98
    %p100 = scmp.ne.s32.totalorder %s89, %s92
    %p101 = scmp.eq.s32.totalorder %s14, 7
    %p102 = por %p100, %p101
    %p103 = scmp.ne.s32.totalorder %s92, %s93
    %p104 = scmp.eq.s32.totalorder %s14, 0
    %p105 = por %p103, %p104
    %p106 = scmp.ne.s32.totalorder %s92, %s93
    %p107 = scmp.eq.s32.totalorder %s15, 7
    %p108 = por %p106, %p107
    %p110 = scmp.ne.s32.totalorder %s93, %s109
    %p111 = scmp.eq.s32.totalorder %s15, 0
    %p112 = por %p110, %p111
    %s113 = ssub.s32 %s16, %s28
    %s114 = ssub.s32 %s17, %s24
    %s115 = sor.u32 %s113, %s114
    %p116 = scmp.eq.s32.totalorder %s115, 0
    %s118 = sadd.s32 %s117, 1
    %s119 = scalar_select %p116, %s117, %s118
    %p122 = pneg %p116
    %p123 = scmp.eq.s32.totalorder %s9, 7
    %p124 = por %p122, %p123
    %p125 = scmp.ne.s32.totalorder %s117, %s120
    %p126 = scmp.eq.s32.totalorder %s9, 0
    %p127 = por %p125, %p126
    %p128 = scmp.ne.s32.totalorder %s117, %s120
    %p129 = scmp.eq.s32.totalorder %s14, 7
    %p130 = por %p128, %p129
    %p131 = scmp.ne.s32.totalorder %s120, %s121
    %p132 = scmp.eq.s32.totalorder %s14, 0
    %p133 = por %p131, %p132
    %p134 = scmp.ne.s32.totalorder %s120, %s121
    %p135 = scmp.eq.s32.totalorder %s15, 7
    %p136 = por %p134, %p135
    %p138 = scmp.ne.s32.totalorder %s121, %s137
    %p139 = scmp.eq.s32.totalorder %s15, 0
    %p140 = por %p138, %p139
    %p141 = scmp.le.s32.totalorder 1, %s9
    %p142 = scmp.lt.s32.totalorder %s9, 9
    %p143 = pnand %p141, %p142
    %p144 = pneg %p143
    // Predicated region
    $region9: #{resnet_block_forward.4} parent=5 // pred_check
      _
    $region10: #{resnet_block_forward.4} parent=5 // pred_check_branch
      %146 = sbr.rel (%p143) target = $region12
    $region11: #{resnet_block_forward.4} parent=5 // pred_region
      %s147 = ssub.s32 %s9, 1
    $region12: #{resnet_block_forward.4} parent=5 // pred_fallthru
      _
    %p148 = scmp.lt.s32.totalorder %s9, 8
    // Predicated region
    $region13: #{resnet_block_forward.4} parent=5 // pred_check
      %p149 = pneg %p148
    $region14: #{resnet_block_forward.4} parent=5 // pred_check_branch
      %151 = sbr.rel (%p149) target = $region16
    $region15: #{resnet_block_forward.4} parent=5 // pred_region
      // Predicated region
      $region17: #{resnet_block_forward.4} parent=15 // pred_check
        %p152 = pneg %p43
      $region18: #{resnet_block_forward.4} parent=15 // pred_check_branch
        %154 = sbr.rel (%p152) target = $region20
      $region19: #{resnet_block_forward.4} parent=15 // pred_region
        %p155 = scmp.lt.s32.totalorder %s16, 1
        %s156 = scalar_select %p155, %s16, 1
        %p157 = scmp.lt.s32.totalorder %s17, 3
        %s158 = scalar_select %p157, %s17, 3
        %s159 = smul.addr %s156, 4
        %s160 = sadd.s32 %s158, %s159
        %s161 = smul.addr %s160, 8
        %s162 = scalar_lea.vmem %s0, %s161
      $region20: #{resnet_block_forward.4} parent=15 // pred_fallthru
        _
      // Predicated region
      $region21: #{resnet_block_forward.4} parent=15 // pred_check
        %p163 = pneg %p71
      $region22: #{resnet_block_forward.4} parent=15 // pred_check_branch
        %165 = sbr.rel (%p163) target = $region24
      $region23: #{resnet_block_forward.4} parent=15 // pred_region
        %p166 = scmp.lt.s32.totalorder %s16, 1
        %s167 = scalar_select %p166, %s16, 1
        %p168 = scmp.lt.s32.totalorder %s17, 3
        %s169 = scalar_select %p168, %s17, 3
        %s170 = smul.addr %s167, 4
        %s171 = sadd.s32 %s169, %s170
        %s172 = smul.addr %s171, 8
        %s173 = scalar_lea.vmem %s1, %s172
      $region24: #{resnet_block_forward.4} parent=15 // pred_fallthru
        _
      // Predicated region
      $region25: #{resnet_block_forward.4} parent=15 // pred_check
        %p174 = pneg %p99
      $region26: #{resnet_block_forward.4} parent=15 // pred_check_branch
        %176 = sbr.rel (%p174) target = $region28
      $region27: #{resnet_block_forward.4} parent=15 // pred_region
        %p177 = scmp.lt.s32.totalorder %s16, 1
        %s178 = scalar_select %p177, %s16, 1
        %p179 = scmp.lt.s32.totalorder %s17, 3
        %s180 = scalar_select %p179, %s17, 3
        %s181 = smul.addr %s178, 4
        %s182 = sadd.s32 %s180, %s181
        %s183 = smul.addr %s182, 8
        %s184 = scalar_lea.vmem %s2, %s183
      $region28: #{resnet_block_forward.4} parent=15 // pred_fallthru
        _
    $region16: #{resnet_block_forward.4} parent=5 // pred_fallthru
      _
    %p185 = scmp.le.s32.totalorder 1, %s9
    %p186 = scmp.lt.s32.totalorder %s9, 9
    %p187 = pnand %p185, %p186
    %p188 = pneg %p187
    // Predicated region
    $region29: #{resnet_block_forward.4} parent=5 // pred_check
      _
    $region30: #{resnet_block_forward.4} parent=5 // pred_check_branch
      %190 = sbr.rel (%p187) target = $region32
    $region31: #{resnet_block_forward.4} parent=5 // pred_region
      %s191 = ssub.s32 %s9, 1
      %p192 = scmp.lt.s32.totalorder %s18, 1
      %s193 = scalar_select %p192, %s18, 1
      %p194 = scmp.lt.s32.totalorder %s19, 3
      %s195 = scalar_select %p194, %s19, 3
      %s196 = smul.addr %s193, 4
      %s197 = sadd.s32 %s195, %s196
      %s198 = smul.addr %s197, 8
      %s199 = scalar_lea.vmem %s0, %s198
      %p200 = pneg %p49
      %p201 = pneg %p46
      %p202 = scmp.lt.s32.totalorder %s18, 1
      %s203 = scalar_select %p202, %s18, 1
      %p204 = scmp.lt.s32.totalorder %s19, 3
      %s205 = scalar_select %p204, %s19, 3
      %s206 = smul.addr %s203, 4
      %s207 = sadd.s32 %s205, %s206
      %s208 = smul.addr %s207, 8
      %s209 = scalar_lea.vmem %s1, %s208
      %p210 = pneg %p77
      %p211 = pneg %p74
      %p212 = scmp.lt.s32.totalorder %s18, 1
      %s213 = scalar_select %p212, %s18, 1
      %p214 = scmp.lt.s32.totalorder %s19, 3
      %s215 = scalar_select %p214, %s19, 3
      %s216 = smul.addr %s213, 4
      %s217 = sadd.s32 %s215, %s216
      %s218 = smul.addr %s217, 8
      %s219 = scalar_lea.vmem %s2, %s218
      %p220 = pneg %p105
      %p221 = pneg %p102
      %p222 = pneg %p133
      %p223 = pneg %p130
      %p224 = scmp.lt.s32.totalorder %s18, 1
      %s225 = scalar_select %p224, %s18, 1
      %p226 = scmp.lt.s32.totalorder %s19, 3
      %s227 = scalar_select %p226, %s19, 3
      %s228 = smul.addr %s225, 4
      %s229 = sadd.s32 %s227, %s228
      %s230 = smul.addr %s229, 8
      %s231 = scalar_lea.vmem %s3, %s230
      %p232 = scmp.lt.s32.totalorder %s18, 1
      %s233 = scalar_select %p232, %s18, 1
      %p234 = scmp.lt.s32.totalorder %s19, 3
      %s235 = scalar_select %p234, %s19, 3
      %s236 = smul.addr %s233, 4
      %s237 = sadd.s32 %s235, %s236
      %s238 = smul.addr %s237, 8
      %s239 = scalar_lea.vmem %s0, %s238
      %p240 = scmp.lt.s32.totalorder %s18, 1
      %s241 = scalar_select %p240, %s18, 1
      %p242 = scmp.lt.s32.totalorder %s19, 3
      %s243 = scalar_select %p242, %s19, 3
      %s244 = smul.addr %s241, 4
      %s245 = sadd.s32 %s243, %s244
      %s246 = smul.addr %s245, 8
      %s247 = scalar_lea.vmem %s1, %s246
      %p248 = scmp.lt.s32.totalorder %s18, 1
      %s249 = scalar_select %p248, %s18, 1
      %p250 = scmp.lt.s32.totalorder %s19, 3
      %s251 = scalar_select %p250, %s19, 3
      %s252 = smul.addr %s249, 4
      %s253 = sadd.s32 %s251, %s252
      %s254 = smul.addr %s253, 8
      %s255 = scalar_lea.vmem %s2, %s254
      %p256 = scmp.lt.s32.totalorder %s18, 1
      %s257 = scalar_select %p256, %s18, 1
      %p258 = scmp.lt.s32.totalorder %s19, 3
      %s259 = scalar_select %p258, %s19, 3
      %s260 = smul.addr %s257, 4
      %s261 = sadd.s32 %s259, %s260
      %s262 = smul.addr %s261, 8
      %s263 = scalar_lea.vmem %s3, %s262
      %v264 = vld [vmem:[%s239] sm:$0xff]
      %265 = vadd.xlane.f32.xlu0 %v264
      %v266 = vpop.xlane.xlu0 %265
      %v267 = vrot.slane %v266, 4
      %v268 = vadd.f32 %v266, %v267
      %v269 = vrot.slane %v268, 2
      %v270 = vadd.f32 %v268, %v269
      %v271 = vrot.slane %v270, 1
      %v272 = vadd.f32 %v270, %v271
      %v273 = vmul.f32 %v272, 0.0009765625
      %v274 = vsub.f32 %v264, %v273
      %v275 = vmul.f32 %v274, %v274
      %276 = vadd.xlane.f32.xlu0 %v275
      %v277 = vpop.xlane.xlu0 %276
      %v278 = vrot.slane %v277, 4
      %v279 = vadd.f32 %v277, %v278
      %v280 = vrot.slane %v279, 2
      %v281 = vadd.f32 %v279, %v280
      %v282 = vrot.slane %v281, 1
      %v283 = vadd.f32 %v281, %v282
      %v284 = vmul.f32 %v283, 0.0009765625
      %v285 = vadd.f32 %v284, 1e-05
      %v286 = vrsqrt.pop %v285
      %v287 = vld [vmem:[%s247] sm:$0xff]
      %v288 = vld [vmem:[%s255] sm:$0xff]
      %v289 = vmul.f32 %v286, %v287
      %291 = vset.pattern.permute.xlu0 0
      %292 = vperm.xlu0 %291, %v289
      %v293 = vpop.permute.xlu0 %292
      %v295 = vmul.f32 %v274, %v293
      %297 = vset.pattern.permute.xlu0 0
      %298 = vperm.xlu0 %297, %v288
      %v299 = vpop.permute.xlu0 %298
      %v301 = vadd.f32 %v295, %v299
      %v302 = vsub.f32 0.0, %v301
      %v303 = vmul.f32 %v302, 1.442695
      %v304 = vpow.pop %v303
      %v305 = vadd.f32 %v304, 1.0
      %v306 = vrcp.pop %v305
      %v307 = vmul.f32 1.0, %v306
      %v308 = vmul.f32 %v301, %v307
      %309 = vst [vmem:[%s263] sm:$0xff] %v308
      %p310 = scmp.lt.s32.totalorder %s18, 1
      %s311 = scalar_select %p310, %s18, 1
      %p312 = scmp.lt.s32.totalorder %s19, 3
      %s313 = scalar_select %p312, %s19, 3
      %s314 = smul.addr %s311, 4
      %s315 = sadd.s32 %s313, %s314
      %s316 = smul.addr %s315, 8
      %s317 = scalar_lea.vmem %s3, %s316
      // Predicated region
      $region33: #{resnet_block_forward.4} parent=31 // pred_check
        %p318 = pneg %p130
      $region34: #{resnet_block_forward.4} parent=31 // pred_check_branch
        %320 = sbr.rel (%p318) target = $region36
      $region35: #{resnet_block_forward.4} parent=31 // pred_region
        _
      $region36: #{resnet_block_forward.4} parent=31 // pred_fallthru
        _
    $region32: #{resnet_block_forward.4} parent=5 // pred_fallthru
      _
    %p321 = scmp.le.s32.totalorder 2, %s9
    // Predicated region
    $region37: #{resnet_block_forward.4} parent=5 // pred_check
      %p322 = pneg %p321
    $region38: #{resnet_block_forward.4} parent=5 // pred_check_branch
      %324 = sbr.rel (%p322) target = $region40
    $region39: #{resnet_block_forward.4} parent=5 // pred_region
      %s325 = ssub.s32 %s9, 2
      // Predicated region
      $region41: #{resnet_block_forward.4} parent=39 // pred_check
        %p326 = pneg %p136
      $region42: #{resnet_block_forward.4} parent=39 // pred_check_branch
        %328 = sbr.rel (%p326) target = $region44
      $region43: #{resnet_block_forward.4} parent=39 // pred_region
        %p329 = scmp.lt.s32.totalorder %s20, 1
        %s330 = scalar_select %p329, %s20, 1
        %p331 = scmp.lt.s32.totalorder %s21, 3
        %s332 = scalar_select %p331, %s21, 3
        %s333 = smul.addr %s330, 4
        %s334 = sadd.s32 %s332, %s333
        %s335 = smul.addr %s334, 8
        %s336 = scalar_lea.vmem %s3, %s335
      $region44: #{resnet_block_forward.4} parent=39 // pred_fallthru
        _
    $region40: #{resnet_block_forward.4} parent=5 // pred_fallthru
      _
  $region6: #{resnet_block_forward.4} parent=0 // loop_footer
    %s13 = sadd.s32 1, %s9
  $region7: #{resnet_block_forward.4} parent=0 // loop_footer_branch
    %8 = sbr.rel target = $region3
  $region8: #{resnet_block_forward.4} parent=0 // loop_exit
    _

// kernel: resnet_block_forward.3
$region0: #{resnet_block_forward.3}
  #allocation0 [shape = 'u32[]', space=smem, size = 0x4, offset = 0x4, fixed_abs, tag = 'smem constant byte address 0x4 - core index']
  #allocation1 [shape = 'u32[144,128]{1,0:T(1,128)}', space=vmem, size = 0x12000, scoped, tag = 'internal scratch']
  %s0 = inlined_call_operand.vmem [shape: f32[2,4,512], index: 0, kind: input, shape index: {}]
  %s1 = inlined_call_operand.vmem [shape: f32[8,4], index: 1, kind: input, shape index: {}]
  %s2 = inlined_call_operand.vmem [shape: f32[8,1], index: 2, kind: input, shape index: {}]
  %s3 = inlined_call_operand.vmem [shape: f32[2,8,512], index: 3, kind: output, shape index: {}]
  %s4 = sld [smem:[#allocation0]]
  $region45: #{resnet_block_forward.3} parent=0
    _
  %s6 = ssub.s32 1, %s4
  %s7 = scalar_select 0, %s6, %s4
  loop: start=0, step=1, limit=10
  $region2: #{resnet_block_forward.3} parent=0 // loop_pre_header
    _
  $region3: #{resnet_block_forward.3} parent=0 // loop_header
    %s9 = sphi 0, %s13
    %p10 = scmp.ge.s32.totalorder %s9, 10
    %s16 = sphi 0, %s28
    %s17 = sphi 0, %s24
    %s18 = sphi 0, %s16
    %s19 = sphi 0, %s17
    %s20 = sphi 0, %s18
    %s21 = sphi 0, %s19
    %s33 = sphi 0, %s35
    %s36 = sphi 0, %s33
    %s37 = sphi 0, %s36
    %s53 = sphi 0, %s37
    %s57 = sphi 0, %s57
    %s59 = sphi 0, %s57
    %s60 = sphi 0, %s59
    %s74 = sphi 0, %s60
    %s78 = sphi 0, %s78
    %s80 = sphi 0, %s78
    %s81 = sphi 0, %s80
    %s95 = sphi 0, %s81
    %s103 = sphi 0, %s105
    %s106 = sphi 0, %s103
    %s107 = sphi 0, %s106
    %s123 = sphi 0, %s107
  $region4: #{resnet_block_forward.3} parent=0 // loop_header_branch
    %12 = sbr.rel (%p10) target = $region8
  $region5: #{resnet_block_forward.3} parent=0 // loop_body
    %s14 = ssub.s32 %s9, 1
    %s15 = ssub.s32 %s9, 2
    %s22 = sadd.s32 1, %s17
    %p23 = scmp.ge.s32.totalorder %s22, 4
    %s24 = scalar_select %p23, 0, %s22
    %s25 = sadd.s32 1, %s16
    %s26 = scalar_select %p23, %s25, %s16
    %p27 = scmp.ge.s32.totalorder %s26, 2
    %s28 = scalar_select %p27, 0, %s26
    %s29 = ssub.s32 %s16, %s28
    %s30 = ssub.s32 %s17, %s24
    %s31 = sor.u32 %s29, %s30
    %p32 = scmp.eq.s32.totalorder %s31, 0
    %s34 = sadd.s32 %s33, 1
    %s35 = scalar_select %p32, %s33, %s34
    %p38 = pneg %p32
    %p39 = scmp.eq.s32.totalorder %s9, 7
    %p40 = por %p38, %p39
    %p41 = scmp.ne.s32.totalorder %s33, %s36
    %p42 = scmp.eq.s32.totalorder %s9, 0
    %p43 = por %p41, %p42
    %p44 = scmp.ne.s32.totalorder %s33, %s36
    %p45 = scmp.eq.s32.totalorder %s14, 7
    %p46 = por %p44, %p45
    %p47 = scmp.ne.s32.totalorder %s36, %s37
    %p48 = scmp.eq.s32.totalorder %s14, 0
    %p49 = por %p47, %p48
    %p50 = scmp.ne.s32.totalorder %s36, %s37
    %p51 = scmp.eq.s32.totalorder %s15, 7
    %p52 = por %p50, %p51
    %p54 = scmp.ne.s32.totalorder %s37, %s53
    %p55 = scmp.eq.s32.totalorder %s15, 0
    %p56 = por %p54, %p55
    %s58 = sadd.s32 %s57, 1
    %p61 = scmp.eq.s32.totalorder %s9, 7
    %p62 = scmp.ne.s32.totalorder %s57, %s59
    %p63 = scmp.eq.s32.totalorder %s9, 0
    %p64 = por %p62, %p63
    %p65 = scmp.ne.s32.totalorder %s57, %s59
    %p66 = scmp.eq.s32.totalorder %s14, 7
    %p67 = por %p65, %p66
    %p68 = scmp.ne.s32.totalorder %s59, %s60
    %p69 = scmp.eq.s32.totalorder %s14, 0
    %p70 = por %p68, %p69
    %p71 = scmp.ne.s32.totalorder %s59, %s60
    %p72 = scmp.eq.s32.totalorder %s15, 7
    %p73 = por %p71, %p72
    %p75 = scmp.ne.s32.totalorder %s60, %s74
    %p76 = scmp.eq.s32.totalorder %s15, 0
    %p77 = por %p75, %p76
    %s79 = sadd.s32 %s78, 1
    %p82 = scmp.eq.s32.totalorder %s9, 7
    %p83 = scmp.ne.s32.totalorder %s78, %s80
    %p84 = scmp.eq.s32.totalorder %s9, 0
    %p85 = por %p83, %p84
    %p86 = scmp.ne.s32.totalorder %s78, %s80
    %p87 = scmp.eq.s32.totalorder %s14, 7
    %p88 = por %p86, %p87
    %p89 = scmp.ne.s32.totalorder %s80, %s81
    %p90 = scmp.eq.s32.totalorder %s14, 0
    %p91 = por %p89, %p90
    %p92 = scmp.ne.s32.totalorder %s80, %s81
    %p93 = scmp.eq.s32.totalorder %s15, 7
    %p94 = por %p92, %p93
    %p96 = scmp.ne.s32.totalorder %s81, %s95
    %p97 = scmp.eq.s32.totalorder %s15, 0
    %p98 = por %p96, %p97
    %s99 = ssub.s32 %s16, %s28
    %s100 = ssub.s32 %s17, %s24
    %s101 = sor.u32 %s99, %s100
    %p102 = scmp.eq.s32.totalorder %s101, 0
    %s104 = sadd.s32 %s103, 1
    %s105 = scalar_select %p102, %s103, %s104
    %p108 = pneg %p102
    %p109 = scmp.eq.s32.totalorder %s9, 7
    %p110 = por %p108, %p109
    %p111 = scmp.ne.s32.totalorder %s103, %s106
    %p112 = scmp.eq.s32.totalorder %s9, 0
    %p113 = por %p111, %p112
    %p114 = scmp.ne.s32.totalorder %s103, %s106
    %p115 = scmp.eq.s32.totalorder %s14, 7
    %p116 = por %p114, %p115
    %p117 = scmp.ne.s32.totalorder %s106, %s107
    %p118 = scmp.eq.s32.totalorder %s14, 0
    %p119 = por %p117, %p118
    %p120 = scmp.ne.s32.totalorder %s106, %s107
    %p121 = scmp.eq.s32.totalorder %s15, 7
    %p122 = por %p120, %p121
    %p124 = scmp.ne.s32.totalorder %s107, %s123
    %p125 = scmp.eq.s32.totalorder %s15, 0
    %p126 = por %p124, %p125
    %p127 = scmp.le.s32.totalorder 1, %s9
    %p128 = scmp.lt.s32.totalorder %s9, 9
    %p129 = pnand %p127, %p128
    %p130 = pneg %p129
    // Predicated region
    $region9: #{resnet_block_forward.3} parent=5 // pred_check
      _
    $region10: #{resnet_block_forward.3} parent=5 // pred_check_branch
      %132 = sbr.rel (%p129) target = $region12
    $region11: #{resnet_block_forward.3} parent=5 // pred_region
      %s133 = ssub.s32 %s9, 1
      // Predicated region
      $region13: #{resnet_block_forward.3} parent=11 // pred_check
        %p134 = pneg %p70
      $region14: #{resnet_block_forward.3} parent=11 // pred_check_branch
        %136 = sbr.rel (%p134) target = $region16
      $region15: #{resnet_block_forward.3} parent=11 // pred_region
        _
      $region16: #{resnet_block_forward.3} parent=11 // pred_fallthru
        _
      // Predicated region
      $region17: #{resnet_block_forward.3} parent=11 // pred_check
        %p137 = pneg %p91
      $region18: #{resnet_block_forward.3} parent=11 // pred_check_branch
        %139 = sbr.rel (%p137) target = $region20
      $region19: #{resnet_block_forward.3} parent=11 // pred_region
        _
      $region20: #{resnet_block_forward.3} parent=11 // pred_fallthru
        _
    $region12: #{resnet_block_forward.3} parent=5 // pred_fallthru
      _
    %p140 = scmp.lt.s32.totalorder %s9, 8
    // Predicated region
    $region21: #{resnet_block_forward.3} parent=5 // pred_check
      %p141 = pneg %p140
    $region22: #{resnet_block_forward.3} parent=5 // pred_check_branch
      %143 = sbr.rel (%p141) target = $region24
    $region23: #{resnet_block_forward.3} parent=5 // pred_region
      // Predicated region
      $region25: #{resnet_block_forward.3} parent=23 // pred_check
        %p144 = pneg %p43
      $region26: #{resnet_block_forward.3} parent=23 // pred_check_branch
        %146 = sbr.rel (%p144) target = $region28
      $region27: #{resnet_block_forward.3} parent=23 // pred_region
        %p147 = scmp.lt.s32.totalorder %s16, 1
        %s148 = scalar_select %p147, %s16, 1
        %p149 = scmp.lt.s32.totalorder %s17, 3
        %s150 = scalar_select %p149, %s17, 3
        %s151 = smul.addr %s148, 4
        %s152 = sadd.s32 %s150, %s151
        %s153 = smul.addr %s152, 4
        %s154 = scalar_lea.vmem %s0, %s153
      $region28: #{resnet_block_forward.3} parent=23 // pred_fallthru
        _
    $region24: #{resnet_block_forward.3} parent=5 // pred_fallthru
      _
    %p155 = scmp.le.s32.totalorder 1, %s9
    %p156 = scmp.lt.s32.totalorder %s9, 9
    %p157 = pnand %p155, %p156
    %p158 = pneg %p157
    // Predicated region
    $region29: #{resnet_block_forward.3} parent=5 // pred_check
      _
    $region30: #{resnet_block_forward.3} parent=5 // pred_check_branch
      %160 = sbr.rel (%p157) target = $region32
    $region31: #{resnet_block_forward.3} parent=5 // pred_region
      %s161 = ssub.s32 %s9, 1
      %p162 = scmp.lt.s32.totalorder %s18, 1
      %s163 = scalar_select %p162, %s18, 1
      %p164 = scmp.lt.s32.totalorder %s19, 3
      %s165 = scalar_select %p164, %s19, 3
      %s166 = smul.addr %s163, 4
      %s167 = sadd.s32 %s165, %s166
      %s168 = smul.addr %s167, 4
      %s169 = scalar_lea.vmem %s0, %s168
      %p170 = pneg %p49
      %p171 = pneg %p46
      %p172 = pneg %p70
      %p173 = pneg %p67
      %p174 = pneg %p91
      %p175 = pneg %p88
      %p176 = pneg %p119
      %p177 = pneg %p116
      %p178 = scmp.lt.s32.totalorder %s18, 1
      %s179 = scalar_select %p178, %s18, 1
      %p180 = scmp.lt.s32.totalorder %s19, 3
      %s181 = scalar_select %p180, %s19, 3
      %s182 = smul.addr %s179, 4
      %s183 = sadd.s32 %s181, %s182
      %s184 = smul.addr %s183, 8
      %s185 = scalar_lea.vmem %s3, %s184
      %p186 = scmp.lt.s32.totalorder %s18, 1
      %s187 = scalar_select %p186, %s18, 1
      %p188 = scmp.lt.s32.totalorder %s19, 3
      %s189 = scalar_select %p188, %s19, 3
      %s190 = smul.addr %s187, 4
      %s191 = sadd.s32 %s189, %s190
      %s192 = smul.addr %s191, 4
      %s193 = scalar_lea.vmem %s0, %s192
      %p194 = scmp.lt.s32.totalorder %s18, 1
      %s195 = scalar_select %p194, %s18, 1
      %p196 = scmp.lt.s32.totalorder %s19, 3
      %s197 = scalar_select %p196, %s19, 3
      %s198 = smul.addr %s195, 4
      %s199 = sadd.s32 %s197, %s198
      %s200 = smul.addr %s199, 8
      %s201 = scalar_lea.vmem %s3, %s200
      %v202 = vld [vmem:[%s193] sm:$0xf]
      %v203 = vld [vmem:[%s1] sm:$0xff]
      %v204 = vld [vmem:[%s2] sm:$0xff]
      %206 = vset.pattern.permute.xlu0 0
      %207 = vperm.xlu0 %206, %v204
      %v208 = vpop.permute.xlu0 %207
      %vm210 = vcmask 31744
      %v212 = vsel %vm210, %v203, 0
      %vm214 = vcmask 1043456
      %v216 = vsel %vm214, %v202, 0
      %218 = vmatprep.subr.mxu0 0.0
      %219 = vmatpush1.msra.mxu0 %v216
      %220 = vmatprep.subr.mxu0 0.0
      %221 = vmatpush1.msra.mxu0 0.0
      %222 = vmatprep.subr.mxu0 0.0
      %223 = vmatpush1.msra.mxu0 0.0
      %224 = vmatprep.subr.mxu0 0.0
      %225 = vmatpush1.msra.mxu0 0.0
      %226 = vmatprep.subr.mxu0 0.0
      %227 = vmatpush1.msra.mxu0 0.0
      %228 = vmatprep.subr.mxu0 0.0
      %229 = vmatpush1.msra.mxu0 0.0
      %230 = vmatprep.subr.mxu0 0.0
      %231 = vmatpush1.msra.mxu0 0.0
      %232 = vmatprep.subr.mxu0 0.0
      %233 = vmatpush1.msra.mxu0 0.0
      %234 = vmatprep.subr.mxu0 0.0
      %235 = vmatpush1.msra.mxu0 0.0
      %236 = vmatprep.subr.mxu0 0.0
      %237 = vmatpush1.msra.mxu0 0.0
      %238 = vmatprep.subr.mxu0 0.0
      %239 = vmatpush1.msra.mxu0 0.0
      %240 = vmatprep.subr.mxu0 0.0
      %241 = vmatpush1.msra.mxu0 0.0
      %242 = vmatprep.subr.mxu0 0.0
      %243 = vmatpush1.msra.mxu0 0.0
      %244 = vmatprep.subr.mxu0 0.0
      %245 = vmatpush1.msra.mxu0 0.0
      %246 = vmatprep.subr.mxu0 0.0
      %247 = vmatpush1.msra.mxu0 0.0
      %248 = vmatprep.subr.mxu0 0.0
      %249 = vmatpush1.msra.mxu0 0.0
      %250 = vmatprep.subr.mxu0 0.0
      %251 = vmatpush1.msra.mxu0 0.0
      %252 = vmatprep.subr.mxu0 0.0
      %253 = vmatpush1.msra.mxu0 0.0
      %254 = vmatprep.subr.mxu0 0.0
      %255 = vmatpush1.msra.mxu0 0.0
      %256 = vmatprep.subr.mxu0 0.0
      %257 = vmatpush1.msra.mxu0 0.0
      %258 = vmatprep.subr.mxu0 0.0
      %259 = vmatpush1.msra.mxu0 0.0
      %260 = vmatprep.subr.mxu0 0.0
      %261 = vmatpush1.msra.mxu0 0.0
      %262 = vmatprep.subr.mxu0 0.0
      %263 = vmatpush1.msra.mxu0 0.0
      %264 = vmatprep.subr.mxu0 0.0
      %265 = vmatpush1.msra.mxu0 0.0
      %266 = vmatprep.subr.mxu0 0.0
      %267 = vmatpush1.msra.mxu0 0.0
      %268 = vmatprep.subr.mxu0 0.0
      %269 = vmatpush1.msra.mxu0 0.0
      %270 = vmatprep.subr.mxu0 0.0
      %271 = vmatpush1.msra.mxu0 0.0
      %272 = vmatprep.subr.mxu0 0.0
      %273 = vmatpush1.msra.mxu0 0.0
      %274 = vmatprep.subr.mxu0 0.0
      %275 = vmatpush1.msra.mxu0 0.0
      %276 = vmatprep.subr.mxu0 0.0
      %277 = vmatpush1.msra.mxu0 0.0
      %278 = vmatprep.subr.mxu0 0.0
      %279 = vmatpush1.msra.mxu0 0.0
      %280 = vmatprep.subr.mxu0 0.0
      %281 = vmatpush1.msra.mxu0 0.0
      %282 = vmatprep.mubr.f32.mxu0 0.0
      %283 = vmatmul.mubr.f32.gmra.mrb[0].mxu0 %v212
      %v284 = vpop.f32.mrb[0].mxu0
      %v285 = vadd.f32 %v208, %v284
      %v286 = vpop.f32.mrb[0].mxu0
      %287 = vdwg.mxu0
      %288 = vst [vmem:[%s201] sm:$0xff] %v285
      %p289 = scmp.lt.s32.totalorder %s18, 1
      %s290 = scalar_select %p289, %s18, 1
      %p291 = scmp.lt.s32.totalorder %s19, 3
      %s292 = scalar_select %p291, %s19, 3
      %s293 = smul.addr %s290, 4
      %s294 = sadd.s32 %s292, %s293
      %s295 = smul.addr %s294, 8
      %s296 = scalar_lea.vmem %s3, %s295
      // Predicated region
      $region33: #{resnet_block_forward.3} parent=31 // pred_check
        %p297 = pneg %p116
      $region34: #{resnet_block_forward.3} parent=31 // pred_check_branch
        %299 = sbr.rel (%p297) target = $region36
      $region35: #{resnet_block_forward.3} parent=31 // pred_region
        _
      $region36: #{resnet_block_forward.3} parent=31 // pred_fallthru
        _
    $region32: #{resnet_block_forward.3} parent=5 // pred_fallthru
      _
    %p300 = scmp.le.s32.totalorder 2, %s9
    // Predicated region
    $region37: #{resnet_block_forward.3} parent=5 // pred_check
      %p301 = pneg %p300
    $region38: #{resnet_block_forward.3} parent=5 // pred_check_branch
      %303 = sbr.rel (%p301) target = $region40
    $region39: #{resnet_block_forward.3} parent=5 // pred_region
      %s304 = ssub.s32 %s9, 2
      // Predicated region
      $region41: #{resnet_block_forward.3} parent=39 // pred_check
        %p305 = pneg %p122
      $region42: #{resnet_block_forward.3} parent=39 // pred_check_branch
        %307 = sbr.rel (%p305) target = $region44
      $region43: #{resnet_block_forward.3} parent=39 // pred_region
        %p308 = scmp.lt.s32.totalorder %s20, 1
        %s309 = scalar_select %p308, %s20, 1
        %p310 = scmp.lt.s32.totalorder %s21, 3
        %s311 = scalar_select %p310, %s21, 3
        %s312 = smul.addr %s309, 4
        %s313 = sadd.s32 %s311, %s312
        %s314 = smul.addr %s313, 8
        %s315 = scalar_lea.vmem %s3, %s314
      $region44: #{resnet_block_forward.3} parent=39 // pred_fallthru
        _
    $region40: #{resnet_block_forward.3} parent=5 // pred_fallthru
      _
  $region6: #{resnet_block_forward.3} parent=0 // loop_footer
    %s13 = sadd.s32 1, %s9
  $region7: #{resnet_block_forward.3} parent=0 // loop_footer_branch
    %8 = sbr.rel target = $region3
  $region8: #{resnet_block_forward.3} parent=0 // loop_exit
    _

// kernel: resnet_block_forward.5
$region0: #{resnet_block_forward.5}
  #allocation0 [shape = 'u32[]', space=smem, size = 0x4, offset = 0x4, fixed_abs, tag = 'smem constant byte address 0x4 - core index']
  #allocation1 [shape = 'u32[144,128]{1,0:T(1,128)}', space=vmem, size = 0x12000, scoped, tag = 'internal scratch']
  %s0 = inlined_call_operand.vmem [shape: f32[2,4,8,128], index: 0, kind: input, shape index: {}]
  %s1 = inlined_call_operand.vmem [shape: f32[2,4,8,1], index: 1, kind: input, shape index: {}]
  %s2 = inlined_call_operand.vmem [shape: f32[2,4,8,1], index: 2, kind: input, shape index: {}]
  %s3 = inlined_call_operand.vmem [shape: f32[2,4,8,128], index: 3, kind: input, shape index: {}]
  %s4 = inlined_call_operand.vmem [shape: f32[2,4,8,128], index: 4, kind: output, shape index: {}]
  %s5 = sld [smem:[#allocation0]]
  $region49: #{resnet_block_forward.5} parent=0
    _
  %s7 = ssub.s32 1, %s5
  %s8 = scalar_select 0, %s7, %s5
  loop: start=0, step=1, limit=10
  $region2: #{resnet_block_forward.5} parent=0 // loop_pre_header
    _
  $region3: #{resnet_block_forward.5} parent=0 // loop_header
    %s10 = sphi 0, %s14
    %p11 = scmp.ge.s32.totalorder %s10, 10
    %s17 = sphi 0, %s29
    %s18 = sphi 0, %s25
    %s19 = sphi 0, %s17
    %s20 = sphi 0, %s18
    %s21 = sphi 0, %s19
    %s22 = sphi 0, %s20
    %s34 = sphi 0, %s36
    %s37 = sphi 0, %s34
    %s38 = sphi 0, %s37
    %s54 = sphi 0, %s38
    %s62 = sphi 0, %s64
    %s65 = sphi 0, %s62
    %s66 = sphi 0, %s65
    %s82 = sphi 0, %s66
    %s90 = sphi 0, %s92
    %s93 = sphi 0, %s90
    %s94 = sphi 0, %s93
    %s110 = sphi 0, %s94
    %s118 = sphi 0, %s120
    %s121 = sphi 0, %s118
    %s122 = sphi 0, %s121
    %s138 = sphi 0, %s122
    %s146 = sphi 0, %s148
    %s149 = sphi 0, %s146
    %s150 = sphi 0, %s149
    %s166 = sphi 0, %s150
  $region4: #{resnet_block_forward.5} parent=0 // loop_header_branch
    %13 = sbr.rel (%p11) target = $region8
  $region5: #{resnet_block_forward.5} parent=0 // loop_body
    %s15 = ssub.s32 %s10, 1
    %s16 = ssub.s32 %s10, 2
    %s23 = sadd.s32 1, %s18
    %p24 = scmp.ge.s32.totalorder %s23, 4
    %s25 = scalar_select %p24, 0, %s23
    %s26 = sadd.s32 1, %s17
    %s27 = scalar_select %p24, %s26, %s17
    %p28 = scmp.ge.s32.totalorder %s27, 2
    %s29 = scalar_select %p28, 0, %s27
    %s30 = ssub.s32 %s17, %s29
    %s31 = ssub.s32 %s18, %s25
    %s32 = sor.u32 %s30, %s31
    %p33 = scmp.eq.s32.totalorder %s32, 0
    %s35 = sadd.s32 %s34, 1
    %s36 = scalar_select %p33, %s34, %s35
    %p39 = pneg %p33
    %p40 = scmp.eq.s32.totalorder %s10, 7
    %p41 = por %p39, %p40
    %p42 = scmp.ne.s32.totalorder %s34, %s37
    %p43 = scmp.eq.s32.totalorder %s10, 0
    %p44 = por %p42, %p43
    %p45 = scmp.ne.s32.totalorder %s34, %s37
    %p46 = scmp.eq.s32.totalorder %s15, 7
    %p47 = por %p45, %p46
    %p48 = scmp.ne.s32.totalorder %s37, %s38
    %p49 = scmp.eq.s32.totalorder %s15, 0
    %p50 = por %p48, %p49
    %p51 = scmp.ne.s32.totalorder %s37, %s38
    %p52 = scmp.eq.s32.totalorder %s16, 7
    %p53 = por %p51, %p52
    %p55 = scmp.ne.s32.totalorder %s38, %s54
    %p56 = scmp.eq.s32.totalorder %s16, 0
    %p57 = por %p55, %p56
    %s58 = ssub.s32 %s17, %s29
    %s59 = ssub.s32 %s18, %s25
    %s60 = sor.u32 %s58, %s59
    %p61 = scmp.eq.s32.totalorder %s60, 0
    %s63 = sadd.s32 %s62, 1
    %s64 = scalar_select %p61, %s62, %s63
    %p67 = pneg %p61
    %p68 = scmp.eq.s32.totalorder %s10, 7
    %p69 = por %p67, %p68
    %p70 = scmp.ne.s32.totalorder %s62, %s65
    %p71 = scmp.eq.s32.totalorder %s10, 0
    %p72 = por %p70, %p71
    %p73 = scmp.ne.s32.totalorder %s62, %s65
    %p74 = scmp.eq.s32.totalorder %s15, 7
    %p75 = por %p73, %p74
    %p76 = scmp.ne.s32.totalorder %s65, %s66
    %p77 = scmp.eq.s32.totalorder %s15, 0
    %p78 = por %p76, %p77
    %p79 = scmp.ne.s32.totalorder %s65, %s66
    %p80 = scmp.eq.s32.totalorder %s16, 7
    %p81 = por %p79, %p80
    %p83 = scmp.ne.s32.totalorder %s66, %s82
    %p84 = scmp.eq.s32.totalorder %s16, 0
    %p85 = por %p83, %p84
    %s86 = ssub.s32 %s17, %s29
    %s87 = ssub.s32 %s18, %s25
    %s88 = sor.u32 %s86, %s87
    %p89 = scmp.eq.s32.totalorder %s88, 0
    %s91 = sadd.s32 %s90, 1
    %s92 = scalar_select %p89, %s90, %s91
    %p95 = pneg %p89
    %p96 = scmp.eq.s32.totalorder %s10, 7
    %p97 = por %p95, %p96
    %p98 = scmp.ne.s32.totalorder %s90, %s93
    %p99 = scmp.eq.s32.totalorder %s10, 0
    %p100 = por %p98, %p99
    %p101 = scmp.ne.s32.totalorder %s90, %s93
    %p102 = scmp.eq.s32.totalorder %s15, 7
    %p103 = por %p101, %p102
    %p104 = scmp.ne.s32.totalorder %s93, %s94
    %p105 = scmp.eq.s32.totalorder %s15, 0
    %p106 = por %p104, %p105
    %p107 = scmp.ne.s32.totalorder %s93, %s94
    %p108 = scmp.eq.s32.totalorder %s16, 7
    %p109 = por %p107, %p108
    %p111 = scmp.ne.s32.totalorder %s94, %s110
    %p112 = scmp.eq.s32.totalorder %s16, 0
    %p113 = por %p111, %p112
    %s114 = ssub.s32 %s17, %s29
    %s115 = ssub.s32 %s18, %s25
    %s116 = sor.u32 %s114, %s115
    %p117 = scmp.eq.s32.totalorder %s116, 0
    %s119 = sadd.s32 %s118, 1
    %s120 = scalar_select %p117, %s118, %s119
    %p123 = pneg %p117
    %p124 = scmp.eq.s32.totalorder %s10, 7
    %p125 = por %p123, %p124
    %p126 = scmp.ne.s32.totalorder %s118, %s121
    %p127 = scmp.eq.s32.totalorder %s10, 0
    %p128 = por %p126, %p127
    %p129 = scmp.ne.s32.totalorder %s118, %s121
    %p130 = scmp.eq.s32.totalorder %s15, 7
    %p131 = por %p129, %p130
    %p132 = scmp.ne.s32.totalorder %s121, %s122
    %p133 = scmp.eq.s32.totalorder %s15, 0
    %p134 = por %p132, %p133
    %p135 = scmp.ne.s32.totalorder %s121, %s122
    %p136 = scmp.eq.s32.totalorder %s16, 7
    %p137 = por %p135, %p136
    %p139 = scmp.ne.s32.totalorder %s122, %s138
    %p140 = scmp.eq.s32.totalorder %s16, 0
    %p141 = por %p139, %p140
    %s142 = ssub.s32 %s17, %s29
    %s143 = ssub.s32 %s18, %s25
    %s144 = sor.u32 %s142, %s143
    %p145 = scmp.eq.s32.totalorder %s144, 0
    %s147 = sadd.s32 %s146, 1
    %s148 = scalar_select %p145, %s146, %s147
    %p151 = pneg %p145
    %p152 = scmp.eq.s32.totalorder %s10, 7
    %p153 = por %p151, %p152
    %p154 = scmp.ne.s32.totalorder %s146, %s149
    %p155 = scmp.eq.s32.totalorder %s10, 0
    %p156 = por %p154, %p155
    %p157 = scmp.ne.s32.totalorder %s146, %s149
    %p158 = scmp.eq.s32.totalorder %s15, 7
    %p159 = por %p157, %p158
    %p160 = scmp.ne.s32.totalorder %s149, %s150
    %p161 = scmp.eq.s32.totalorder %s15, 0
    %p162 = por %p160, %p161
    %p163 = scmp.ne.s32.totalorder %s149, %s150
    %p164 = scmp.eq.s32.totalorder %s16, 7
    %p165 = por %p163, %p164
    %p167 = scmp.ne.s32.totalorder %s150, %s166
    %p168 = scmp.eq.s32.totalorder %s16, 0
    %p169 = por %p167, %p168
    %p170 = scmp.le.s32.totalorder 1, %s10
    %p171 = scmp.lt.s32.totalorder %s10, 9
    %p172 = pnand %p170, %p171
    %p173 = pneg %p172
    // Predicated region
    $region9: #{resnet_block_forward.5} parent=5 // pred_check
      _
    $region10: #{resnet_block_forward.5} parent=5 // pred_check_branch
      %175 = sbr.rel (%p172) target = $region12
    $region11: #{resnet_block_forward.5} parent=5 // pred_region
      %s176 = ssub.s32 %s10, 1
    $region12: #{resnet_block_forward.5} parent=5 // pred_fallthru
      _
    %p177 = scmp.lt.s32.totalorder %s10, 8
    // Predicated region
    $region13: #{resnet_block_forward.5} parent=5 // pred_check
      %p178 = pneg %p177
    $region14: #{resnet_block_forward.5} parent=5 // pred_check_branch
      %180 = sbr.rel (%p178) target = $region16
    $region15: #{resnet_block_forward.5} parent=5 // pred_region
      // Predicated region
      $region17: #{resnet_block_forward.5} parent=15 // pred_check
        %p181 = pneg %p44
      $region18: #{resnet_block_forward.5} parent=15 // pred_check_branch
        %183 = sbr.rel (%p181) target = $region20
      $region19: #{resnet_block_forward.5} parent=15 // pred_region
        %p184 = scmp.lt.s32.totalorder %s17, 1
        %s185 = scalar_select %p184, %s17, 1
        %p186 = scmp.lt.s32.totalorder %s18, 3
        %s187 = scalar_select %p186, %s18, 3
        %s188 = smul.addr %s185, 4
        %s189 = sadd.s32 %s187, %s188
        %s190 = smul.addr %s189, 8
        %s191 = scalar_lea.vmem %s0, %s190
      $region20: #{resnet_block_forward.5} parent=15 // pred_fallthru
        _
      // Predicated region
      $region21: #{resnet_block_forward.5} parent=15 // pred_check
        %p192 = pneg %p72
      $region22: #{resnet_block_forward.5} parent=15 // pred_check_branch
        %194 = sbr.rel (%p192) target = $region24
      $region23: #{resnet_block_forward.5} parent=15 // pred_region
        %p195 = scmp.lt.s32.totalorder %s17, 1
        %s196 = scalar_select %p195, %s17, 1
        %p197 = scmp.lt.s32.totalorder %s18, 3
        %s198 = scalar_select %p197, %s18, 3
        %s199 = smul.addr %s196, 4
        %s200 = sadd.s32 %s198, %s199
        %s201 = smul.addr %s200, 8
        %s202 = scalar_lea.vmem %s1, %s201
      $region24: #{resnet_block_forward.5} parent=15 // pred_fallthru
        _
      // Predicated region
      $region25: #{resnet_block_forward.5} parent=15 // pred_check
        %p203 = pneg %p100
      $region26: #{resnet_block_forward.5} parent=15 // pred_check_branch
        %205 = sbr.rel (%p203) target = $region28
      $region27: #{resnet_block_forward.5} parent=15 // pred_region
        %p206 = scmp.lt.s32.totalorder %s17, 1
        %s207 = scalar_select %p206, %s17, 1
        %p208 = scmp.lt.s32.totalorder %s18, 3
        %s209 = scalar_select %p208, %s18, 3
        %s210 = smul.addr %s207, 4
        %s211 = sadd.s32 %s209, %s210
        %s212 = smul.addr %s211, 8
        %s213 = scalar_lea.vmem %s2, %s212
      $region28: #{resnet_block_forward.5} parent=15 // pred_fallthru
        _
      // Predicated region
      $region29: #{resnet_block_forward.5} parent=15 // pred_check
        %p214 = pneg %p128
      $region30: #{resnet_block_forward.5} parent=15 // pred_check_branch
        %216 = sbr.rel (%p214) target = $region32
      $region31: #{resnet_block_forward.5} parent=15 // pred_region
        %p217 = scmp.lt.s32.totalorder %s17, 1
        %s218 = scalar_select %p217, %s17, 1
        %p219 = scmp.lt.s32.totalorder %s18, 3
        %s220 = scalar_select %p219, %s18, 3
        %s221 = smul.addr %s218, 4
        %s222 = sadd.s32 %s220, %s221
        %s223 = smul.addr %s222, 8
        %s224 = scalar_lea.vmem %s3, %s223
      $region32: #{resnet_block_forward.5} parent=15 // pred_fallthru
        _
    $region16: #{resnet_block_forward.5} parent=5 // pred_fallthru
      _
    %p225 = scmp.le.s32.totalorder 1, %s10
    %p226 = scmp.lt.s32.totalorder %s10, 9
    %p227 = pnand %p225, %p226
    %p228 = pneg %p227
    // Predicated region
    $region33: #{resnet_block_forward.5} parent=5 // pred_check
      _
    $region34: #{resnet_block_forward.5} parent=5 // pred_check_branch
      %230 = sbr.rel (%p227) target = $region36
    $region35: #{resnet_block_forward.5} parent=5 // pred_region
      %s231 = ssub.s32 %s10, 1
      %p232 = scmp.lt.s32.totalorder %s19, 1
      %s233 = scalar_select %p232, %s19, 1
      %p234 = scmp.lt.s32.totalorder %s20, 3
      %s235 = scalar_select %p234, %s20, 3
      %s236 = smul.addr %s233, 4
      %s237 = sadd.s32 %s235, %s236
      %s238 = smul.addr %s237, 8
      %s239 = scalar_lea.vmem %s0, %s238
      %p240 = pneg %p50
      %p241 = pneg %p47
      %p242 = scmp.lt.s32.totalorder %s19, 1
      %s243 = scalar_select %p242, %s19, 1
      %p244 = scmp.lt.s32.totalorder %s20, 3
      %s245 = scalar_select %p244, %s20, 3
      %s246 = smul.addr %s243, 4
      %s247 = sadd.s32 %s245, %s246
      %s248 = smul.addr %s247, 8
      %s249 = scalar_lea.vmem %s1, %s248
      %p250 = pneg %p78
      %p251 = pneg %p75
      %p252 = scmp.lt.s32.totalorder %s19, 1
      %s253 = scalar_select %p252, %s19, 1
      %p254 = scmp.lt.s32.totalorder %s20, 3
      %s255 = scalar_select %p254, %s20, 3
      %s256 = smul.addr %s253, 4
      %s257 = sadd.s32 %s255, %s256
      %s258 = smul.addr %s257, 8
      %s259 = scalar_lea.vmem %s2, %s258
      %p260 = pneg %p106
      %p261 = pneg %p103
      %p262 = scmp.lt.s32.totalorder %s19, 1
      %s263 = scalar_select %p262, %s19, 1
      %p264 = scmp.lt.s32.totalorder %s20, 3
      %s265 = scalar_select %p264, %s20, 3
      %s266 = smul.addr %s263, 4
      %s267 = sadd.s32 %s265, %s266
      %s268 = smul.addr %s267, 8
      %s269 = scalar_lea.vmem %s3, %s268
      %p270 = pneg %p134
      %p271 = pneg %p131
      %p272 = pneg %p162
      %p273 = pneg %p159
      %p274 = scmp.lt.s32.totalorder %s19, 1
      %s275 = scalar_select %p274, %s19, 1
      %p276 = scmp.lt.s32.totalorder %s20, 3
      %s277 = scalar_select %p276, %s20, 3
      %s278 = smul.addr %s275, 4
      %s279 = sadd.s32 %s277, %s278
      %s280 = smul.addr %s279, 8
      %s281 = scalar_lea.vmem %s4, %s280
      %p282 = scmp.lt.s32.totalorder %s19, 1
      %s283 = scalar_select %p282, %s19, 1
      %p284 = scmp.lt.s32.totalorder %s20, 3
      %s285 = scalar_select %p284, %s20, 3
      %s286 = smul.addr %s283, 4
      %s287 = sadd.s32 %s285, %s286
      %s288 = smul.addr %s287, 8
      %s289 = scalar_lea.vmem %s0, %s288
      %p290 = scmp.lt.s32.totalorder %s19, 1
      %s291 = scalar_select %p290, %s19, 1
      %p292 = scmp.lt.s32.totalorder %s20, 3
      %s293 = scalar_select %p292, %s20, 3
      %s294 = smul.addr %s291, 4
      %s295 = sadd.s32 %s293, %s294
      %s296 = smul.addr %s295, 8
      %s297 = scalar_lea.vmem %s1, %s296
      %p298 = scmp.lt.s32.totalorder %s19, 1
      %s299 = scalar_select %p298, %s19, 1
      %p300 = scmp.lt.s32.totalorder %s20, 3
      %s301 = scalar_select %p300, %s20, 3
      %s302 = smul.addr %s299, 4
      %s303 = sadd.s32 %s301, %s302
      %s304 = smul.addr %s303, 8
      %s305 = scalar_lea.vmem %s2, %s304
      %p306 = scmp.lt.s32.totalorder %s19, 1
      %s307 = scalar_select %p306, %s19, 1
      %p308 = scmp.lt.s32.totalorder %s20, 3
      %s309 = scalar_select %p308, %s20, 3
      %s310 = smul.addr %s307, 4
      %s311 = sadd.s32 %s309, %s310
      %s312 = smul.addr %s311, 8
      %s313 = scalar_lea.vmem %s3, %s312
      %p314 = scmp.lt.s32.totalorder %s19, 1
      %s315 = scalar_select %p314, %s19, 1
      %p316 = scmp.lt.s32.totalorder %s20, 3
      %s317 = scalar_select %p316, %s20, 3
      %s318 = smul.addr %s315, 4
      %s319 = sadd.s32 %s317, %s318
      %s320 = smul.addr %s319, 8
      %s321 = scalar_lea.vmem %s4, %s320
      %v322 = vld [vmem:[%s289] sm:$0xff]
      %323 = vadd.xlane.f32.xlu0 %v322
      %v324 = vpop.xlane.xlu0 %323
      %v325 = vrot.slane %v324, 4
      %v326 = vadd.f32 %v324, %v325
      %v327 = vrot.slane %v326, 2
      %v328 = vadd.f32 %v326, %v327
      %v329 = vrot.slane %v328, 1
      %v330 = vadd.f32 %v328, %v329
      %v331 = vmul.f32 %v330, 0.0009765625
      %v332 = vsub.f32 %v322, %v331
      %v333 = vmul.f32 %v332, %v332
      %334 = vadd.xlane.f32.xlu0 %v333
      %v335 = vpop.xlane.xlu0 %334
      %v336 = vrot.slane %v335, 4
      %v337 = vadd.f32 %v335, %v336
      %v338 = vrot.slane %v337, 2
      %v339 = vadd.f32 %v337, %v338
      %v340 = vrot.slane %v339, 1
      %v341 = vadd.f32 %v339, %v340
      %v342 = vmul.f32 %v341, 0.0009765625
      %v343 = vadd.f32 %v342, 1e-05
      %v344 = vrsqrt.pop %v343
      %v345 = vld [vmem:[%s297] sm:$0xff]
      %v346 = vld [vmem:[%s305] sm:$0xff]
      %v347 = vmul.f32 %v344, %v345
      %349 = vset.pattern.permute.xlu0 0
      %350 = vperm.xlu0 %349, %v347
      %v351 = vpop.permute.xlu0 %350
      %v353 = vmul.f32 %v332, %v351
      %355 = vset.pattern.permute.xlu0 0
      %356 = vperm.xlu0 %355, %v346
      %v357 = vpop.permute.xlu0 %356
      %v359 = vadd.f32 %v353, %v357
      %v360 = vsub.f32 0.0, %v359
      %v361 = vmul.f32 %v360, 1.442695
      %v362 = vpow.pop %v361
      %v363 = vadd.f32 %v362, 1.0
      %v364 = vrcp.pop %v363
      %v365 = vmul.f32 1.0, %v364
      %v366 = vmul.f32 %v359, %v365
      %v367 = vld [vmem:[%s313] sm:$0xff]
      %v368 = vadd.f32 %v366, %v367
      %369 = vst [vmem:[%s321] sm:$0xff] %v368
      %p370 = scmp.lt.s32.totalorder %s19, 1
      %s371 = scalar_select %p370, %s19, 1
      %p372 = scmp.lt.s32.totalorder %s20, 3
      %s373 = scalar_select %p372, %s20, 3
      %s374 = smul.addr %s371, 4
      %s375 = sadd.s32 %s373, %s374
      %s376 = smul.addr %s375, 8
      %s377 = scalar_lea.vmem %s4, %s376
      // Predicated region
      $region37: #{resnet_block_forward.5} parent=35 // pred_check
        %p378 = pneg %p159
      $region38: #{resnet_block_forward.5} parent=35 // pred_check_branch
        %380 = sbr.rel (%p378) target = $region40
      $region39: #{resnet_block_forward.5} parent=35 // pred_region
        _
      $region40: #{resnet_block_forward.5} parent=35 // pred_fallthru
        _
    $region36: #{resnet_block_forward.5} parent=5 // pred_fallthru
      _
    %p381 = scmp.le.s32.totalorder 2, %s10
    // Predicated region
    $region41: #{resnet_block_forward.5} parent=5 // pred_check
      %p382 = pneg %p381
    $region42: #{resnet_block_forward.5} parent=5 // pred_check_branch
      %384 = sbr.rel (%p382) target = $region44
    $region43: #{resnet_block_forward.5} parent=5 // pred_region
      %s385 = ssub.s32 %s10, 2
      // Predicated region
      $region45: #{resnet_block_forward.5} parent=43 // pred_check
        %p386 = pneg %p165
      $region46: #{resnet_block_forward.5} parent=43 // pred_check_branch
        %388 = sbr.rel (%p386) target = $region48
      $region47: #{resnet_block_forward.5} parent=43 // pred_region
        %p389 = scmp.lt.s32.totalorder %s21, 1
        %s390 = scalar_select %p389, %s21, 1
        %p391 = scmp.lt.s32.totalorder %s22, 3
        %s392 = scalar_select %p391, %s22, 3
        %s393 = smul.addr %s390, 4
        %s394 = sadd.s32 %s392, %s393
        %s395 = smul.addr %s394, 8
        %s396 = scalar_lea.vmem %s4, %s395
      $region48: #{resnet_block_forward.5} parent=43 // pred_fallthru
        _
    $region44: #{resnet_block_forward.5} parent=5 // pred_fallthru
      _
  $region6: #{resnet_block_forward.5} parent=0 // loop_footer
    %s14 = sadd.s32 1, %s10
  $region7: #{resnet_block_forward.5} parent=0 // loop_footer_branch
    %9 = sbr.rel target = $region3
  $region8: #{resnet_block_forward.5} parent=0 // loop_exit
    _

</llo_original>
